<compile_context>
chip_gen: v7x
topology: tpu7x:2x2x1
jax: 0.10.0
libtpu: 0.0.40
codegen_flags: <defaults>
</compile_context>

<pallas_src>
import jax
import jax.numpy as jnp
from jax import lax
from jax.experimental import pallas as pl
from jax.experimental.pallas import tpu as pltpu


def crnn_kernel(cw_ref, cb_ref, x_ref, wih_ref, whh_ref, b_ref, wo_ref, bo_ref,
                out_ref, xproj_ref):
    # x_ref: (S*Bp, F) flattened frames, Bp = padded batch (multiple of 8 sublanes).
    SBp, _ = x_ref.shape
    Bp, _ = out_ref.shape
    S = SBp // Bp
    H = whh_ref.shape[0]

    cw = cw_ref[0]
    cb = cb_ref[0]

    # 1x1 single-filter conv == scalar scale + bias, then ReLU.
    # TODO(synk): dropout1/2/3 are identity here (eval mode); no RNG mask applied.
    feat = jnp.maximum(x_ref[...] * cw + cb, 0.0)                      # (S*Bp, F)

    # Hoisted input projection for ALL timesteps in one MXU call:
    #   xproj[t*Bp:(t+1)*Bp] = feat_t @ Wih + (b_ih + b_hh)
    xproj_ref[...] = (
        jnp.dot(feat, wih_ref[...], preferred_element_type=jnp.float32)
        + b_ref[...])                                                  # (S*Bp, H)

    whh = whh_ref[...]                                                 # (H, H)

    # Serial recurrence: per step only one (Bp,H)x(H,H) matmul + EUP tanh.
    def step(t, h):
        xp = xproj_ref[pl.ds(t * Bp, Bp), :]                           # sublane-aligned (Bp % 8 == 0)
        return jnp.tanh(xp + jnp.dot(h, whh, preferred_element_type=jnp.float32))

    h_last = lax.fori_loop(0, S, step, jnp.zeros((Bp, H), jnp.float32),
                           unroll=True)

    # Final Linear only on the last timestep (forward returns Y[:, -1, :]).
    out_ref[...] = (
        jnp.dot(h_last, wo_ref[...], preferred_element_type=jnp.float32)
        + bo_ref[...]
    ).astype(out_ref.dtype)


def crnn_forward(x, params):
    B, S, Cin, R, Cw = x.shape
    F = Cin * R * Cw
    H = params["whh"].shape[0]
    NC = params["wo"].shape[1]

    # Pad batch up to a multiple of 8 so it fills the sublane axis.
    Bp = max(8, ((B + 7) // 8) * 8)

    # glue: flatten frames, move sequence leading, pad batch -> (S*Bp, F)
    x_sbf = jnp.transpose(x.reshape(B, S, F), (1, 0, 2)).astype(jnp.float32)  # (S, B, F)
    if Bp != B:
        x_sbf = jnp.pad(x_sbf, ((0, 0), (0, Bp - B), (0, 0)))
    x2d = x_sbf.reshape(S * Bp, F)

    cw = params["conv_w"].reshape(1).astype(jnp.float32)
    cb = params["conv_b"].reshape(1).astype(jnp.float32)

    # NOTE: for very long sequences on v7x (64 MiB VMEM/TC), chunk x2d with a manual
    # double-buffered prefetch instead of holding the whole slab resident. At these
    # shapes the slab is a few tens of KiB, so a single resident copy is optimal.
    out = pl.pallas_call(
        crnn_kernel,
        out_shape=jax.ShapeDtypeStruct((Bp, NC), jnp.float32),
        in_specs=[
            pl.BlockSpec(memory_space=pltpu.MemorySpace.SMEM),   # conv weight (scalar)
            pl.BlockSpec(memory_space=pltpu.MemorySpace.SMEM),   # conv bias (scalar)
            pl.BlockSpec(memory_space=pltpu.MemorySpace.VMEM),   # x  (S*Bp, F)
            pl.BlockSpec(memory_space=pltpu.MemorySpace.VMEM),   # Wih (F, H) pre-transposed
            pl.BlockSpec(memory_space=pltpu.MemorySpace.VMEM),   # Whh (H, H) pre-transposed
            pl.BlockSpec(memory_space=pltpu.MemorySpace.VMEM),   # b = b_ih + b_hh (1, H)
            pl.BlockSpec(memory_space=pltpu.MemorySpace.VMEM),   # Wo (H, NC) pre-transposed
            pl.BlockSpec(memory_space=pltpu.MemorySpace.VMEM),   # bo (1, NC)
        ],
        out_specs=pl.BlockSpec(memory_space=pltpu.MemorySpace.VMEM),
        scratch_shapes=[pltpu.VMEM((S * Bp, H), jnp.float32)],   # hoisted x-projection
    )(cw, cb, x2d, params["wih"], params["whh"], params["b"],
      params["wo"], params["bo"])

    return out[:B]


def crnn_ref(x, params):
    """Pure-JAX reference of the same forward pass (eval mode)."""
    B, S, Cin, R, Cw = x.shape
    F = Cin * R * Cw
    feats = jnp.maximum(
        x.reshape(B, S, F) * params["conv_w"][0, 0] + params["conv_b"][0, 0], 0.0)

    def step(h, xt):
        h = jnp.tanh(xt @ params["wih"] + h @ params["whh"] + params["b"])
        return h, None

    h0 = jnp.zeros((B, params["whh"].shape[0]), jnp.float32)
    h_last, _ = lax.scan(step, h0, jnp.transpose(feats, (1, 0, 2)))
    return h_last @ params["wo"] + params["bo"]


if __name__ == "__main__":
    # Small shapes consistent with the module's forward:
    # X: (batch=2, seq=8, input_streams=1, num_rows=8, num_columns=16)
    B, S, R, C = 2, 8, 8, 16
    H, NC = 32, 4          # hidden_size, num_classes
    F = R * C              # features after 1x1 conv with 1 filter

    key = jax.random.PRNGKey(0)
    ks = jax.random.split(key, 8)
    x = jax.random.normal(ks[0], (B, S, 1, R, C), jnp.float32)

    params = dict(
        conv_w=jax.random.normal(ks[1], (1, 1), jnp.float32),
        conv_b=jax.random.normal(ks[2], (1, 1), jnp.float32) * 0.1,
        wih=jax.random.normal(ks[3], (F, H), jnp.float32) * (1.0 / jnp.sqrt(F)),
        whh=jax.random.normal(ks[4], (H, H), jnp.float32) * (1.0 / jnp.sqrt(H)),
        b=jax.random.normal(ks[5], (1, H), jnp.float32) * 0.1,
        wo=jax.random.normal(ks[6], (H, NC), jnp.float32) * (1.0 / jnp.sqrt(H)),
        bo=jax.random.normal(ks[7], (1, NC), jnp.float32) * 0.1,
    )

    out = jax.block_until_ready(crnn_forward(x, params))
    ref = crnn_ref(x, params)

    assert out.shape == (B, NC), out.shape
    assert jnp.allclose(out, ref, rtol=1e-4, atol=1e-4), (out, ref)
    print("KERNEL_OK")
</pallas_src>

<mosaic_0001>
module attributes {stable_mosaic.version = 11 : i64} {
  func.func @crnn_kernel(%arg0: memref<1xf32, #tpu.memory_space<smem>>, %arg1: memref<1xf32, #tpu.memory_space<smem>>, %arg2: memref<64x128xf32, #tpu.memory_space<vmem>>, %arg3: memref<128x32xf32, #tpu.memory_space<vmem>>, %arg4: memref<32x32xf32, #tpu.memory_space<vmem>>, %arg5: memref<1x32xf32, #tpu.memory_space<vmem>>, %arg6: memref<32x4xf32, #tpu.memory_space<vmem>>, %arg7: memref<1x4xf32, #tpu.memory_space<vmem>>, %arg8: memref<8x4xf32, #tpu.memory_space<vmem>>, %arg9: memref<64x32xf32, #tpu.memory_space<vmem>>) attributes {dimension_semantics = [], scalar_prefetch = 0 : i64, scratch_operands = 1 : i64, tpu.core_type = #tpu.core_type<tc>} {
    %c0 = arith.constant 0 : index
    %0 = memref.load %arg0[%c0] : memref<1xf32, #tpu.memory_space<smem>>
    %c0_0 = arith.constant 0 : index
    %1 = memref.load %arg1[%c0_0] : memref<1xf32, #tpu.memory_space<smem>>
    %c0_1 = arith.constant 0 : index
    %c0_2 = arith.constant 0 : index
    %2 = vector.load %arg2[%c0_1, %c0_2] : memref<64x128xf32, #tpu.memory_space<vmem>>, vector<64x128xf32>
    %3 = vector.broadcast %0 : f32 to vector<64x128xf32>
    %4 = arith.mulf %2, %3 : vector<64x128xf32>
    %5 = vector.broadcast %1 : f32 to vector<64x128xf32>
    %6 = arith.addf %4, %5 : vector<64x128xf32>
    %cst = arith.constant 0.000000e+00 : f32
    %7 = vector.broadcast %cst : f32 to vector<64x128xf32>
    %8 = arith.maximumf %6, %7 : vector<64x128xf32>
    %c0_3 = arith.constant 0 : index
    %c0_4 = arith.constant 0 : index
    %9 = vector.load %arg3[%c0_3, %c0_4] : memref<128x32xf32, #tpu.memory_space<vmem>>, vector<128x32xf32>
    %cst_5 = arith.constant dense<0.000000e+00> : vector<64x32xf32>
    %10 = tpu.matmul %8, %9, %cst_5 {dimension_numbers = #tpu.dot_dimension_numbers<[1], [0], [0], [1], [0, 0, 1, 1], [], []>} : vector<64x128xf32>, vector<128x32xf32>, vector<64x32xf32> -> vector<64x32xf32>
    %c0_6 = arith.constant 0 : index
    %c0_7 = arith.constant 0 : index
    %11 = vector.load %arg5[%c0_6, %c0_7] : memref<1x32xf32, #tpu.memory_space<vmem>>, vector<1x32xf32>
    %12 = vector.broadcast %11 : vector<1x32xf32> to vector<64x32xf32>
    %13 = arith.addf %10, %12 : vector<64x32xf32>
    %c0_8 = arith.constant 0 : index
    %c0_9 = arith.constant 0 : index
    %14 = vector.load %arg9[%c0_8, %c0_9] : memref<64x32xf32, #tpu.memory_space<vmem>>, vector<64x32xf32>
    tpu.vector_store %arg9[%c0_8, %c0_9], %13 {strides = array<i32>} : memref<64x32xf32, #tpu.memory_space<vmem>>, vector<64x32xf32>,
    %c0_10 = arith.constant 0 : index
    %c0_11 = arith.constant 0 : index
    %15 = vector.load %arg4[%c0_10, %c0_11] : memref<32x32xf32, #tpu.memory_space<vmem>>, vector<32x32xf32>
    %cst_12 = arith.constant 0.000000e+00 : f32
    %16 = vector.broadcast %cst_12 : f32 to vector<8x32xf32>
    %c0_i32 = arith.constant 0 : i32
    %c8_i32 = arith.constant 8 : i32
    %17 = arith.muli %c0_i32, %c8_i32 : i32
    %18 = arith.index_cast %17 : i32 to index
    %c0_13 = arith.constant 0 : index
    %19 = vector.load %arg9[%18, %c0_13] : memref<64x32xf32, #tpu.memory_space<vmem>>, vector<8x32xf32>
    %cst_14 = arith.constant dense<0.000000e+00> : vector<8x32xf32>
    %20 = tpu.matmul %16, %15, %cst_14 {dimension_numbers = #tpu.dot_dimension_numbers<[1], [0], [0], [1], [0, 0, 1, 1], [], []>} : vector<8x32xf32>, vector<32x32xf32>, vector<8x32xf32> -> vector<8x32xf32>
    %21 = arith.addf %19, %20 : vector<8x32xf32>
    %22 = math.tanh %21 : vector<8x32xf32>
    %c1_i32 = arith.constant 1 : i32
    %c8_i32_15 = arith.constant 8 : i32
    %23 = arith.muli %c1_i32, %c8_i32_15 : i32
    %24 = arith.index_cast %23 : i32 to index
    %c0_16 = arith.constant 0 : index
    %25 = vector.load %arg9[%24, %c0_16] : memref<64x32xf32, #tpu.memory_space<vmem>>, vector<8x32xf32>
    %cst_17 = arith.constant dense<0.000000e+00> : vector<8x32xf32>
    %26 = tpu.matmul %22, %15, %cst_17 {dimension_numbers = #tpu.dot_dimension_numbers<[1], [0], [0], [1], [0, 0, 1, 1], [], []>} : vector<8x32xf32>, vector<32x32xf32>, vector<8x32xf32> -> vector<8x32xf32>
    %27 = arith.addf %25, %26 : vector<8x32xf32>
    %28 = math.tanh %27 : vector<8x32xf32>
    %c2_i32 = arith.constant 2 : i32
    %c8_i32_18 = arith.constant 8 : i32
    %29 = arith.muli %c2_i32, %c8_i32_18 : i32
    %30 = arith.index_cast %29 : i32 to index
    %c0_19 = arith.constant 0 : index
    %31 = vector.load %arg9[%30, %c0_19] : memref<64x32xf32, #tpu.memory_space<vmem>>, vector<8x32xf32>
    %cst_20 = arith.constant dense<0.000000e+00> : vector<8x32xf32>
    %32 = tpu.matmul %28, %15, %cst_20 {dimension_numbers = #tpu.dot_dimension_numbers<[1], [0], [0], [1], [0, 0, 1, 1], [], []>} : vector<8x32xf32>, vector<32x32xf32>, vector<8x32xf32> -> vector<8x32xf32>
    %33 = arith.addf %31, %32 : vector<8x32xf32>
    %34 = math.tanh %33 : vector<8x32xf32>
    %c3_i32 = arith.constant 3 : i32
    %c8_i32_21 = arith.constant 8 : i32
    %35 = arith.muli %c3_i32, %c8_i32_21 : i32
    %36 = arith.index_cast %35 : i32 to index
    %c0_22 = arith.constant 0 : index
    %37 = vector.load %arg9[%36, %c0_22] : memref<64x32xf32, #tpu.memory_space<vmem>>, vector<8x32xf32>
    %cst_23 = arith.constant dense<0.000000e+00> : vector<8x32xf32>
    %38 = tpu.matmul %34, %15, %cst_23 {dimension_numbers = #tpu.dot_dimension_numbers<[1], [0], [0], [1], [0, 0, 1, 1], [], []>} : vector<8x32xf32>, vector<32x32xf32>, vector<8x32xf32> -> vector<8x32xf32>
    %39 = arith.addf %37, %38 : vector<8x32xf32>
    %40 = math.tanh %39 : vector<8x32xf32>
    %c4_i32 = arith.constant 4 : i32
    %c8_i32_24 = arith.constant 8 : i32
    %41 = arith.muli %c4_i32, %c8_i32_24 : i32
    %42 = arith.index_cast %41 : i32 to index
    %c0_25 = arith.constant 0 : index
    %43 = vector.load %arg9[%42, %c0_25] : memref<64x32xf32, #tpu.memory_space<vmem>>, vector<8x32xf32>
    %cst_26 = arith.constant dense<0.000000e+00> : vector<8x32xf32>
    %44 = tpu.matmul %40, %15, %cst_26 {dimension_numbers = #tpu.dot_dimension_numbers<[1], [0], [0], [1], [0, 0, 1, 1], [], []>} : vector<8x32xf32>, vector<32x32xf32>, vector<8x32xf32> -> vector<8x32xf32>
    %45 = arith.addf %43, %44 : vector<8x32xf32>
    %46 = math.tanh %45 : vector<8x32xf32>
    %c5_i32 = arith.constant 5 : i32
    %c8_i32_27 = arith.constant 8 : i32
    %47 = arith.muli %c5_i32, %c8_i32_27 : i32
    %48 = arith.index_cast %47 : i32 to index
    %c0_28 = arith.constant 0 : index
    %49 = vector.load %arg9[%48, %c0_28] : memref<64x32xf32, #tpu.memory_space<vmem>>, vector<8x32xf32>
    %cst_29 = arith.constant dense<0.000000e+00> : vector<8x32xf32>
    %50 = tpu.matmul %46, %15, %cst_29 {dimension_numbers = #tpu.dot_dimension_numbers<[1], [0], [0], [1], [0, 0, 1, 1], [], []>} : vector<8x32xf32>, vector<32x32xf32>, vector<8x32xf32> -> vector<8x32xf32>
    %51 = arith.addf %49, %50 : vector<8x32xf32>
    %52 = math.tanh %51 : vector<8x32xf32>
    %c6_i32 = arith.constant 6 : i32
    %c8_i32_30 = arith.constant 8 : i32
    %53 = arith.muli %c6_i32, %c8_i32_30 : i32
    %54 = arith.index_cast %53 : i32 to index
    %c0_31 = arith.constant 0 : index
    %55 = vector.load %arg9[%54, %c0_31] : memref<64x32xf32, #tpu.memory_space<vmem>>, vector<8x32xf32>
    %cst_32 = arith.constant dense<0.000000e+00> : vector<8x32xf32>
    %56 = tpu.matmul %52, %15, %cst_32 {dimension_numbers = #tpu.dot_dimension_numbers<[1], [0], [0], [1], [0, 0, 1, 1], [], []>} : vector<8x32xf32>, vector<32x32xf32>, vector<8x32xf32> -> vector<8x32xf32>
    %57 = arith.addf %55, %56 : vector<8x32xf32>
    %58 = math.tanh %57 : vector<8x32xf32>
    %c7_i32 = arith.constant 7 : i32
    %c8_i32_33 = arith.constant 8 : i32
    %59 = arith.muli %c7_i32, %c8_i32_33 : i32
    %60 = arith.index_cast %59 : i32 to index
    %c0_34 = arith.constant 0 : index
    %61 = vector.load %arg9[%60, %c0_34] : memref<64x32xf32, #tpu.memory_space<vmem>>, vector<8x32xf32>
    %cst_35 = arith.constant dense<0.000000e+00> : vector<8x32xf32>
    %62 = tpu.matmul %58, %15, %cst_35 {dimension_numbers = #tpu.dot_dimension_numbers<[1], [0], [0], [1], [0, 0, 1, 1], [], []>} : vector<8x32xf32>, vector<32x32xf32>, vector<8x32xf32> -> vector<8x32xf32>
    %63 = arith.addf %61, %62 : vector<8x32xf32>
    %64 = math.tanh %63 : vector<8x32xf32>
    %c8_i32_36 = arith.constant 8 : i32
    %c0_37 = arith.constant 0 : index
    %c0_38 = arith.constant 0 : index
    %65 = vector.load %arg6[%c0_37, %c0_38] : memref<32x4xf32, #tpu.memory_space<vmem>>, vector<32x4xf32>
    %cst_39 = arith.constant dense<0.000000e+00> : vector<8x4xf32>
    %66 = tpu.matmul %64, %65, %cst_39 {dimension_numbers = #tpu.dot_dimension_numbers<[1], [0], [0], [1], [0, 0, 1, 1], [], []>} : vector<8x32xf32>, vector<32x4xf32>, vector<8x4xf32> -> vector<8x4xf32>
    %c0_40 = arith.constant 0 : index
    %c0_41 = arith.constant 0 : index
    %67 = vector.load %arg7[%c0_40, %c0_41] : memref<1x4xf32, #tpu.memory_space<vmem>>, vector<1x4xf32>
    %68 = vector.broadcast %67 : vector<1x4xf32> to vector<8x4xf32>
    %69 = arith.addf %66, %68 : vector<8x4xf32>
    %c0_42 = arith.constant 0 : index
    %c0_43 = arith.constant 0 : index
    %70 = vector.load %arg8[%c0_42, %c0_43] : memref<8x4xf32, #tpu.memory_space<vmem>>, vector<8x4xf32>
    tpu.vector_store %arg8[%c0_42, %c0_43], %69 {strides = array<i32>} : memref<8x4xf32, #tpu.memory_space<vmem>>, vector<8x4xf32>,
    return
  }
}

</mosaic_0001>

<llo_original>
// kernel: tpu_custom_call.1
$region0: #{tpu_custom_call.1}
  #allocation0 [shape = 'u32[]', space=smem, size = 0x4, offset = 0x4, fixed_abs, tag = 'smem constant byte address 0x4 - core index']
  #allocation1 [shape = 'u32[144,128]{1,0:T(1,128)}', space=vmem, size = 0x12000, scoped, tag = 'internal scratch']
  #allocation2 [shape = 'f32[64,32]{1,0:T(8,128)}', space=vmem, size = 0x8000, scoped, tag = 'scratch operand']
  #allocation3 [shape = 'f32[1]{0:T(128)S(6)}', space=smem, size = 0x200, scoped, tag = 'scoped memory for tpu_custom_call.1']
  #allocation4 [shape = 'f32[1]{0:T(128)S(6)}', space=smem, size = 0x200, scoped, tag = 'scoped memory for tpu_custom_call.1']
  %s0 = inlined_call_operand.<no memory space> [shape: f32[1], index: 0, kind: input, shape index: {}]
  %s1 = inlined_call_operand.<no memory space> [shape: f32[1], index: 1, kind: input, shape index: {}]
  %s2 = inlined_call_operand.vmem [shape: f32[64,128], index: 2, kind: input, shape index: {}]
  %s3 = inlined_call_operand.vmem [shape: f32[128,32], index: 3, kind: input, shape index: {}]
  %s4 = inlined_call_operand.vmem [shape: f32[32,32], index: 4, kind: input, shape index: {}]
  %s5 = inlined_call_operand.vmem [shape: f32[1,32], index: 5, kind: input, shape index: {}]
  %s6 = inlined_call_operand.vmem [shape: f32[32,4], index: 6, kind: input, shape index: {}]
  %s7 = inlined_call_operand.vmem [shape: f32[1,4], index: 7, kind: input, shape index: {}]
  %s8 = inlined_call_operand.vmem [shape: f32[8,4], index: 8, kind: output, shape index: {}]
  %s9 = sld [smem:[#allocation0]]
  $region42: #{tpu_custom_call.1} parent=0
    _
  %s11 = ssub.s32 1, %s9
  %s12 = scalar_select 0, %s11, %s9
  %13 = sst [smem:[#allocation3]] %s0
  %14 = sst [smem:[#allocation4]] %s1
  // Predicated region
  $region2: #{tpu_custom_call.1} parent=0 // pred_check
    _
  $region3: #{tpu_custom_call.1} parent=0 // pred_check_branch
    %16 = sbr.rel (0) target = $region5
  $region4: #{tpu_custom_call.1} parent=0 // pred_region
    _
  $region5: #{tpu_custom_call.1} parent=0 // pred_fallthru
    _
  // Predicated region
  $region6: #{tpu_custom_call.1} parent=0 // pred_check
    _
  $region7: #{tpu_custom_call.1} parent=0 // pred_check_branch
    %18 = sbr.rel (0) target = $region9
  $region8: #{tpu_custom_call.1} parent=0 // pred_region
    _
  $region9: #{tpu_custom_call.1} parent=0 // pred_fallthru
    _
  // Predicated region
  $region10: #{tpu_custom_call.1} parent=0 // pred_check
    _
  $region11: #{tpu_custom_call.1} parent=0 // pred_check_branch
    %20 = sbr.rel (0) target = $region13
  $region12: #{tpu_custom_call.1} parent=0 // pred_region
    _
  $region13: #{tpu_custom_call.1} parent=0 // pred_fallthru
    _
  // Predicated region
  $region14: #{tpu_custom_call.1} parent=0 // pred_check
    _
  $region15: #{tpu_custom_call.1} parent=0 // pred_check_branch
    %22 = sbr.rel (0) target = $region17
  $region16: #{tpu_custom_call.1} parent=0 // pred_region
    _
  $region17: #{tpu_custom_call.1} parent=0 // pred_fallthru
    _
  // Predicated region
  $region18: #{tpu_custom_call.1} parent=0 // pred_check
    _
  $region19: #{tpu_custom_call.1} parent=0 // pred_check_branch
    %24 = sbr.rel (0) target = $region21
  $region20: #{tpu_custom_call.1} parent=0 // pred_region
    _
  $region21: #{tpu_custom_call.1} parent=0 // pred_fallthru
    _
  // Predicated region
  $region22: #{tpu_custom_call.1} parent=0 // pred_check
    _
  $region23: #{tpu_custom_call.1} parent=0 // pred_check_branch
    %26 = sbr.rel (0) target = $region25
  $region24: #{tpu_custom_call.1} parent=0 // pred_region
    _
  $region25: #{tpu_custom_call.1} parent=0 // pred_fallthru
    _
  // Predicated region
  $region26: #{tpu_custom_call.1} parent=0 // pred_check
    _
  $region27: #{tpu_custom_call.1} parent=0 // pred_check_branch
    %28 = sbr.rel (0) target = $region29
  $region28: #{tpu_custom_call.1} parent=0 // pred_region
    _
  $region29: #{tpu_custom_call.1} parent=0 // pred_fallthru
    _
  // Predicated region
  $region30: #{tpu_custom_call.1} parent=0 // pred_check
    _
  $region31: #{tpu_custom_call.1} parent=0 // pred_check_branch
    %30 = sbr.rel (0) target = $region33
  $region32: #{tpu_custom_call.1} parent=0 // pred_region
    _
  $region33: #{tpu_custom_call.1} parent=0 // pred_fallthru
    _
  %s31 = sld [smem:[#allocation3]]
  %s32 = sld [smem:[#allocation4]]
  %v33 = vld [vmem:[%s2] sm:$0xff]
  %v34 = vld [vmem:[%s2 + $0x8] sm:$0xff]
  %v35 = vld [vmem:[%s2 + $0x10] sm:$0xff]
  %v36 = vld [vmem:[%s2 + $0x18] sm:$0xff]
  %v37 = vld [vmem:[%s2 + $0x20] sm:$0xff]
  %v38 = vld [vmem:[%s2 + $0x28] sm:$0xff]
  %v39 = vld [vmem:[%s2 + $0x30] sm:$0xff]
  %v40 = vld [vmem:[%s2 + $0x38] sm:$0xff]
  %v41 = vstv %s31
  %v42 = vmul.f32 %v33, %v41
  %v43 = vmul.f32 %v34, %v41
  %v44 = vmul.f32 %v35, %v41
  %v45 = vmul.f32 %v36, %v41
  %v46 = vmul.f32 %v37, %v41
  %v47 = vmul.f32 %v38, %v41
  %v48 = vmul.f32 %v39, %v41
  %v49 = vmul.f32 %v40, %v41
  %v50 = vstv %s32
  %v51 = vadd.f32 %v42, %v50
  %v52 = vadd.f32 %v43, %v50
  %v53 = vadd.f32 %v44, %v50
  %v54 = vadd.f32 %v45, %v50
  %v55 = vadd.f32 %v46, %v50
  %v56 = vadd.f32 %v47, %v50
  %v57 = vadd.f32 %v48, %v50
  %v58 = vadd.f32 %v49, %v50
  %v59 = vmax.f32 %v51, 0.0
  %v60 = vmax.f32 %v52, 0.0
  %v61 = vmax.f32 %v53, 0.0
  %v62 = vmax.f32 %v54, 0.0
  %v63 = vmax.f32 %v55, 0.0
  %v64 = vmax.f32 %v56, 0.0
  %v65 = vmax.f32 %v57, 0.0
  %v66 = vmax.f32 %v58, 0.0
  %v67 = vld [vmem:[%s3] sm:$0xff]
  %v68 = vld [vmem:[%s3 + $0x8] sm:$0xff]
  %v69 = vld [vmem:[%s3 + $0x10] sm:$0xff]
  %v70 = vld [vmem:[%s3 + $0x18] sm:$0xff]
  %v71 = vld [vmem:[%s3 + $0x20] sm:$0xff]
  %v72 = vld [vmem:[%s3 + $0x28] sm:$0xff]
  %v73 = vld [vmem:[%s3 + $0x30] sm:$0xff]
  %v74 = vld [vmem:[%s3 + $0x38] sm:$0xff]
  %v75 = vld [vmem:[%s3 + $0x40] sm:$0xff]
  %v76 = vld [vmem:[%s3 + $0x48] sm:$0xff]
  %v77 = vld [vmem:[%s3 + $0x50] sm:$0xff]
  %v78 = vld [vmem:[%s3 + $0x58] sm:$0xff]
  %v79 = vld [vmem:[%s3 + $0x60] sm:$0xff]
  %v80 = vld [vmem:[%s3 + $0x68] sm:$0xff]
  %v81 = vld [vmem:[%s3 + $0x70] sm:$0xff]
  %v82 = vld [vmem:[%s3 + $0x78] sm:$0xff]
  %v83 = vld [vmem:[%s5] sm:$0x1]
  %v85 = vlaneseq
  %v86 = vshrl.u32 %v85, 7
  %v87 = vsub.s32 0, %v86
  %v88 = vrot.slane %v83, %v87
  %90 = vmatprep.subr.mxu0 0.0
  %91 = vmatpush1.msra.mxu0 %v67
  %92 = vmatprep.subr.mxu0 0.0
  %93 = vmatpush1.msra.mxu0 %v68
  %94 = vmatprep.subr.mxu0 0.0
  %95 = vmatpush1.msra.mxu0 %v69
  %96 = vmatprep.subr.mxu0 0.0
  %97 = vmatpush1.msra.mxu0 %v70
  %98 = vmatprep.subr.mxu0 0.0
  %99 = vmatpush1.msra.mxu0 %v71
  %100 = vmatprep.subr.mxu0 0.0
  %101 = vmatpush1.msra.mxu0 %v72
  %102 = vmatprep.subr.mxu0 0.0
  %103 = vmatpush1.msra.mxu0 %v73
  %104 = vmatprep.subr.mxu0 0.0
  %105 = vmatpush1.msra.mxu0 %v74
  %106 = vmatprep.subr.mxu0 0.0
  %107 = vmatpush1.msra.mxu0 %v75
  %108 = vmatprep.subr.mxu0 0.0
  %109 = vmatpush1.msra.mxu0 %v76
  %110 = vmatprep.subr.mxu0 0.0
  %111 = vmatpush1.msra.mxu0 %v77
  %112 = vmatprep.subr.mxu0 0.0
  %113 = vmatpush1.msra.mxu0 %v78
  %114 = vmatprep.subr.mxu0 0.0
  %115 = vmatpush1.msra.mxu0 %v79
  %116 = vmatprep.subr.mxu0 0.0
  %117 = vmatpush1.msra.mxu0 %v80
  %118 = vmatprep.subr.mxu0 0.0
  %119 = vmatpush1.msra.mxu0 %v81
  %120 = vmatprep.subr.mxu0 0.0
  %121 = vmatpush1.msra.mxu0 %v82
  %122 = vmatprep.subr.mxu0 0.0
  %123 = vmatpush1.msra.mxu0 0.0
  %124 = vmatprep.subr.mxu0 0.0
  %125 = vmatpush1.msra.mxu0 0.0
  %126 = vmatprep.subr.mxu0 0.0
  %127 = vmatpush1.msra.mxu0 0.0
  %128 = vmatprep.subr.mxu0 0.0
  %129 = vmatpush1.msra.mxu0 0.0
  %130 = vmatprep.subr.mxu0 0.0
  %131 = vmatpush1.msra.mxu0 0.0
  %132 = vmatprep.subr.mxu0 0.0
  %133 = vmatpush1.msra.mxu0 0.0
  %134 = vmatprep.subr.mxu0 0.0
  %135 = vmatpush1.msra.mxu0 0.0
  %136 = vmatprep.subr.mxu0 0.0
  %137 = vmatpush1.msra.mxu0 0.0
  %138 = vmatprep.subr.mxu0 0.0
  %139 = vmatpush1.msra.mxu0 0.0
  %140 = vmatprep.subr.mxu0 0.0
  %141 = vmatpush1.msra.mxu0 0.0
  %142 = vmatprep.subr.mxu0 0.0
  %143 = vmatpush1.msra.mxu0 0.0
  %144 = vmatprep.subr.mxu0 0.0
  %145 = vmatpush1.msra.mxu0 0.0
  %146 = vmatprep.subr.mxu0 0.0
  %147 = vmatpush1.msra.mxu0 0.0
  %148 = vmatprep.subr.mxu0 0.0
  %149 = vmatpush1.msra.mxu0 0.0
  %150 = vmatprep.subr.mxu0 0.0
  %151 = vmatpush1.msra.mxu0 0.0
  %152 = vmatprep.subr.mxu0 0.0
  %153 = vmatpush1.msra.mxu0 0.0
  %154 = vmatprep.mubr.f32.mxu0 0.0
  %155 = vmatmul.mubr.f32.gmra.mrb[0].mxu0 %v59
  %v156 = vpop.f32.mrb[0].mxu0
  %v157 = vadd.f32 %v88, %v156
  %v158 = vpop.f32.mrb[0].mxu0
  %159 = vmatprep.mubr.f32.mxu0 0.0
  %160 = vmatmul.mubr.f32.gmra.mrb[0].mxu0 %v60
  %v161 = vpop.f32.mrb[0].mxu0
  %v162 = vadd.f32 %v88, %v161
  %v163 = vpop.f32.mrb[0].mxu0
  %164 = vmatprep.mubr.f32.mxu0 0.0
  %165 = vmatmul.mubr.f32.gmra.mrb[0].mxu0 %v61
  %v166 = vpop.f32.mrb[0].mxu0
  %v167 = vadd.f32 %v88, %v166
  %v168 = vpop.f32.mrb[0].mxu0
  %169 = vmatprep.mubr.f32.mxu0 0.0
  %170 = vmatmul.mubr.f32.gmra.mrb[0].mxu0 %v62
  %v171 = vpop.f32.mrb[0].mxu0
  %v172 = vadd.f32 %v88, %v171
  %v173 = vpop.f32.mrb[0].mxu0
  %174 = vmatprep.mubr.f32.mxu0 0.0
  %175 = vmatmul.mubr.f32.gmra.mrb[0].mxu0 %v63
  %v176 = vpop.f32.mrb[0].mxu0
  %v177 = vadd.f32 %v88, %v176
  %v178 = vpop.f32.mrb[0].mxu0
  %179 = vmatprep.mubr.f32.mxu0 0.0
  %180 = vmatmul.mubr.f32.gmra.mrb[0].mxu0 %v64
  %v181 = vpop.f32.mrb[0].mxu0
  %v182 = vadd.f32 %v88, %v181
  %v183 = vpop.f32.mrb[0].mxu0
  %184 = vmatprep.mubr.f32.mxu0 0.0
  %185 = vmatmul.mubr.f32.gmra.mrb[0].mxu0 %v65
  %v186 = vpop.f32.mrb[0].mxu0
  %v187 = vadd.f32 %v88, %v186
  %v188 = vpop.f32.mrb[0].mxu0
  %189 = vmatprep.mubr.f32.mxu0 0.0
  %190 = vmatmul.mubr.f32.gmra.mrb[0].mxu0 %v66
  %v191 = vpop.f32.mrb[0].mxu0
  %v192 = vadd.f32 %v88, %v191
  %v193 = vpop.f32.mrb[0].mxu0
  %194 = vdwg.mxu0
  %vm195 = vcmask 261120
  %196 = vst.msk [vmem:[#allocation2] sm:$0xff] %vm195, %v157
  %197 = vst.msk [vmem:[#allocation2 + $0x8] sm:$0xff] %vm195, %v162
  %198 = vst.msk [vmem:[#allocation2 + $0x10] sm:$0xff] %vm195, %v167
  %199 = vst.msk [vmem:[#allocation2 + $0x18] sm:$0xff] %vm195, %v172
  %200 = vst.msk [vmem:[#allocation2 + $0x20] sm:$0xff] %vm195, %v177
  %201 = vst.msk [vmem:[#allocation2 + $0x28] sm:$0xff] %vm195, %v182
  %202 = vst.msk [vmem:[#allocation2 + $0x30] sm:$0xff] %vm195, %v187
  %203 = vst.msk [vmem:[#allocation2 + $0x38] sm:$0xff] %vm195, %v192
  %v204 = vld [vmem:[%s4] sm:$0xff]
  %v205 = vld [vmem:[%s4 + $0x8] sm:$0xff]
  %v206 = vld [vmem:[%s4 + $0x10] sm:$0xff]
  %v207 = vld [vmem:[%s4 + $0x18] sm:$0xff]
  %v208 = vld [vmem:[#allocation2] sm:$0xff]
  %v210 = vsel %vm195, 0.0, 0
  %212 = vmatprep.subr.mxu0 0.0
  %213 = vmatpush1.msra.mxu0 %v204
  %214 = vmatprep.subr.mxu0 0.0
  %215 = vmatpush1.msra.mxu0 %v205
  %216 = vmatprep.subr.mxu0 0.0
  %217 = vmatpush1.msra.mxu0 %v206
  %218 = vmatprep.subr.mxu0 0.0
  %219 = vmatpush1.msra.mxu0 %v207
  %220 = vmatprep.subr.mxu0 0.0
  %221 = vmatpush1.msra.mxu0 0.0
  %222 = vmatprep.subr.mxu0 0.0
  %223 = vmatpush1.msra.mxu0 0.0
  %224 = vmatprep.subr.mxu0 0.0
  %225 = vmatpush1.msra.mxu0 0.0
  %226 = vmatprep.subr.mxu0 0.0
  %227 = vmatpush1.msra.mxu0 0.0
  %228 = vmatprep.subr.mxu0 0.0
  %229 = vmatpush1.msra.mxu0 0.0
  %230 = vmatprep.subr.mxu0 0.0
  %231 = vmatpush1.msra.mxu0 0.0
  %232 = vmatprep.subr.mxu0 0.0
  %233 = vmatpush1.msra.mxu0 0.0
  %234 = vmatprep.subr.mxu0 0.0
  %235 = vmatpush1.msra.mxu0 0.0
  %236 = vmatprep.subr.mxu0 0.0
  %237 = vmatpush1.msra.mxu0 0.0
  %238 = vmatprep.subr.mxu0 0.0
  %239 = vmatpush1.msra.mxu0 0.0
  %240 = vmatprep.subr.mxu0 0.0
  %241 = vmatpush1.msra.mxu0 0.0
  %242 = vmatprep.subr.mxu0 0.0
  %243 = vmatpush1.msra.mxu0 0.0
  %244 = vmatprep.subr.mxu0 0.0
  %245 = vmatpush1.msra.mxu0 0.0
  %246 = vmatprep.subr.mxu0 0.0
  %247 = vmatpush1.msra.mxu0 0.0
  %248 = vmatprep.subr.mxu0 0.0
  %249 = vmatpush1.msra.mxu0 0.0
  %250 = vmatprep.subr.mxu0 0.0
  %251 = vmatpush1.msra.mxu0 0.0
  %252 = vmatprep.subr.mxu0 0.0
  %253 = vmatpush1.msra.mxu0 0.0
  %254 = vmatprep.subr.mxu0 0.0
  %255 = vmatpush1.msra.mxu0 0.0
  %256 = vmatprep.subr.mxu0 0.0
  %257 = vmatpush1.msra.mxu0 0.0
  %258 = vmatprep.subr.mxu0 0.0
  %259 = vmatpush1.msra.mxu0 0.0
  %260 = vmatprep.subr.mxu0 0.0
  %261 = vmatpush1.msra.mxu0 0.0
  %262 = vmatprep.subr.mxu0 0.0
  %263 = vmatpush1.msra.mxu0 0.0
  %264 = vmatprep.subr.mxu0 0.0
  %265 = vmatpush1.msra.mxu0 0.0
  %266 = vmatprep.subr.mxu0 0.0
  %267 = vmatpush1.msra.mxu0 0.0
  %268 = vmatprep.subr.mxu0 0.0
  %269 = vmatpush1.msra.mxu0 0.0
  %270 = vmatprep.subr.mxu0 0.0
  %271 = vmatpush1.msra.mxu0 0.0
  %272 = vmatprep.subr.mxu0 0.0
  %273 = vmatpush1.msra.mxu0 0.0
  %274 = vmatprep.subr.mxu0 0.0
  %275 = vmatpush1.msra.mxu0 0.0
  %276 = vmatprep.mubr.f32.mxu0 0.0
  %277 = vmatmul.mubr.f32.gmra.mrb[0].mxu0 %v210
  %v278 = vpop.f32.mrb[0].mxu0
  %v279 = vadd.f32 0.0, %v278
  %v280 = vpop.f32.mrb[0].mxu0
  %281 = vdwg.mxu0
  %v282 = vadd.f32 %v208, %v279
  %v283 = vtanh.pop %v282
  %v284 = vld [vmem:[#allocation2 + $0x8] sm:$0xff]
  %v286 = vsel %vm195, %v283, 0
  %288 = vmatprep.subr.mxu0 0.0
  %289 = vmatpush1.msra.mxu0 %v204
  %290 = vmatprep.subr.mxu0 0.0
  %291 = vmatpush1.msra.mxu0 %v205
  %292 = vmatprep.subr.mxu0 0.0
  %293 = vmatpush1.msra.mxu0 %v206
  %294 = vmatprep.subr.mxu0 0.0
  %295 = vmatpush1.msra.mxu0 %v207
  %296 = vmatprep.subr.mxu0 0.0
  %297 = vmatpush1.msra.mxu0 0.0
  %298 = vmatprep.subr.mxu0 0.0
  %299 = vmatpush1.msra.mxu0 0.0
  %300 = vmatprep.subr.mxu0 0.0
  %301 = vmatpush1.msra.mxu0 0.0
  %302 = vmatprep.subr.mxu0 0.0
  %303 = vmatpush1.msra.mxu0 0.0
  %304 = vmatprep.subr.mxu0 0.0
  %305 = vmatpush1.msra.mxu0 0.0
  %306 = vmatprep.subr.mxu0 0.0
  %307 = vmatpush1.msra.mxu0 0.0
  %308 = vmatprep.subr.mxu0 0.0
  %309 = vmatpush1.msra.mxu0 0.0
  %310 = vmatprep.subr.mxu0 0.0
  %311 = vmatpush1.msra.mxu0 0.0
  %312 = vmatprep.subr.mxu0 0.0
  %313 = vmatpush1.msra.mxu0 0.0
  %314 = vmatprep.subr.mxu0 0.0
  %315 = vmatpush1.msra.mxu0 0.0
  %316 = vmatprep.subr.mxu0 0.0
  %317 = vmatpush1.msra.mxu0 0.0
  %318 = vmatprep.subr.mxu0 0.0
  %319 = vmatpush1.msra.mxu0 0.0
  %320 = vmatprep.subr.mxu0 0.0
  %321 = vmatpush1.msra.mxu0 0.0
  %322 = vmatprep.subr.mxu0 0.0
  %323 = vmatpush1.msra.mxu0 0.0
  %324 = vmatprep.subr.mxu0 0.0
  %325 = vmatpush1.msra.mxu0 0.0
  %326 = vmatprep.subr.mxu0 0.0
  %327 = vmatpush1.msra.mxu0 0.0
  %328 = vmatprep.subr.mxu0 0.0
  %329 = vmatpush1.msra.mxu0 0.0
  %330 = vmatprep.subr.mxu0 0.0
  %331 = vmatpush1.msra.mxu0 0.0
  %332 = vmatprep.subr.mxu0 0.0
  %333 = vmatpush1.msra.mxu0 0.0
  %334 = vmatprep.subr.mxu0 0.0
  %335 = vmatpush1.msra.mxu0 0.0
  %336 = vmatprep.subr.mxu0 0.0
  %337 = vmatpush1.msra.mxu0 0.0
  %338 = vmatprep.subr.mxu0 0.0
  %339 = vmatpush1.msra.mxu0 0.0
  %340 = vmatprep.subr.mxu0 0.0
  %341 = vmatpush1.msra.mxu0 0.0
  %342 = vmatprep.subr.mxu0 0.0
  %343 = vmatpush1.msra.mxu0 0.0
  %344 = vmatprep.subr.mxu0 0.0
  %345 = vmatpush1.msra.mxu0 0.0
  %346 = vmatprep.subr.mxu0 0.0
  %347 = vmatpush1.msra.mxu0 0.0
  %348 = vmatprep.subr.mxu0 0.0
  %349 = vmatpush1.msra.mxu0 0.0
  %350 = vmatprep.subr.mxu0 0.0
  %351 = vmatpush1.msra.mxu0 0.0
  %352 = vmatprep.mubr.f32.mxu0 0.0
  %353 = vmatmul.mubr.f32.gmra.mrb[0].mxu0 %v286
  %v354 = vpop.f32.mrb[0].mxu0
  %v355 = vadd.f32 0.0, %v354
  %v356 = vpop.f32.mrb[0].mxu0
  %357 = vdwg.mxu0
  %v358 = vadd.f32 %v284, %v355
  %v359 = vtanh.pop %v358
  %v360 = vld [vmem:[#allocation2 + $0x10] sm:$0xff]
  %v362 = vsel %vm195, %v359, 0
  %364 = vmatprep.subr.mxu0 0.0
  %365 = vmatpush1.msra.mxu0 %v204
  %366 = vmatprep.subr.mxu0 0.0
  %367 = vmatpush1.msra.mxu0 %v205
  %368 = vmatprep.subr.mxu0 0.0
  %369 = vmatpush1.msra.mxu0 %v206
  %370 = vmatprep.subr.mxu0 0.0
  %371 = vmatpush1.msra.mxu0 %v207
  %372 = vmatprep.subr.mxu0 0.0
  %373 = vmatpush1.msra.mxu0 0.0
  %374 = vmatprep.subr.mxu0 0.0
  %375 = vmatpush1.msra.mxu0 0.0
  %376 = vmatprep.subr.mxu0 0.0
  %377 = vmatpush1.msra.mxu0 0.0
  %378 = vmatprep.subr.mxu0 0.0
  %379 = vmatpush1.msra.mxu0 0.0
  %380 = vmatprep.subr.mxu0 0.0
  %381 = vmatpush1.msra.mxu0 0.0
  %382 = vmatprep.subr.mxu0 0.0
  %383 = vmatpush1.msra.mxu0 0.0
  %384 = vmatprep.subr.mxu0 0.0
  %385 = vmatpush1.msra.mxu0 0.0
  %386 = vmatprep.subr.mxu0 0.0
  %387 = vmatpush1.msra.mxu0 0.0
  %388 = vmatprep.subr.mxu0 0.0
  %389 = vmatpush1.msra.mxu0 0.0
  %390 = vmatprep.subr.mxu0 0.0
  %391 = vmatpush1.msra.mxu0 0.0
  %392 = vmatprep.subr.mxu0 0.0
  %393 = vmatpush1.msra.mxu0 0.0
  %394 = vmatprep.subr.mxu0 0.0
  %395 = vmatpush1.msra.mxu0 0.0
  %396 = vmatprep.subr.mxu0 0.0
  %397 = vmatpush1.msra.mxu0 0.0
  %398 = vmatprep.subr.mxu0 0.0
  %399 = vmatpush1.msra.mxu0 0.0
  %400 = vmatprep.subr.mxu0 0.0
  %401 = vmatpush1.msra.mxu0 0.0
  %402 = vmatprep.subr.mxu0 0.0
  %403 = vmatpush1.msra.mxu0 0.0
  %404 = vmatprep.subr.mxu0 0.0
  %405 = vmatpush1.msra.mxu0 0.0
  %406 = vmatprep.subr.mxu0 0.0
  %407 = vmatpush1.msra.mxu0 0.0
  %408 = vmatprep.subr.mxu0 0.0
  %409 = vmatpush1.msra.mxu0 0.0
  %410 = vmatprep.subr.mxu0 0.0
  %411 = vmatpush1.msra.mxu0 0.0
  %412 = vmatprep.subr.mxu0 0.0
  %413 = vmatpush1.msra.mxu0 0.0
  %414 = vmatprep.subr.mxu0 0.0
  %415 = vmatpush1.msra.mxu0 0.0
  %416 = vmatprep.subr.mxu0 0.0
  %417 = vmatpush1.msra.mxu0 0.0
  %418 = vmatprep.subr.mxu0 0.0
  %419 = vmatpush1.msra.mxu0 0.0
  %420 = vmatprep.subr.mxu0 0.0
  %421 = vmatpush1.msra.mxu0 0.0
  %422 = vmatprep.subr.mxu0 0.0
  %423 = vmatpush1.msra.mxu0 0.0
  %424 = vmatprep.subr.mxu0 0.0
  %425 = vmatpush1.msra.mxu0 0.0
  %426 = vmatprep.subr.mxu0 0.0
  %427 = vmatpush1.msra.mxu0 0.0
  %428 = vmatprep.mubr.f32.mxu0 0.0
  %429 = vmatmul.mubr.f32.gmra.mrb[0].mxu0 %v362
  %v430 = vpop.f32.mrb[0].mxu0
  %v431 = vadd.f32 0.0, %v430
  %v432 = vpop.f32.mrb[0].mxu0
  %433 = vdwg.mxu0
  %v434 = vadd.f32 %v360, %v431
  %v435 = vtanh.pop %v434
  %v436 = vld [vmem:[#allocation2 + $0x18] sm:$0xff]
  %v438 = vsel %vm195, %v435, 0
  %440 = vmatprep.subr.mxu0 0.0
  %441 = vmatpush1.msra.mxu0 %v204
  %442 = vmatprep.subr.mxu0 0.0
  %443 = vmatpush1.msra.mxu0 %v205
  %444 = vmatprep.subr.mxu0 0.0
  %445 = vmatpush1.msra.mxu0 %v206
  %446 = vmatprep.subr.mxu0 0.0
  %447 = vmatpush1.msra.mxu0 %v207
  %448 = vmatprep.subr.mxu0 0.0
  %449 = vmatpush1.msra.mxu0 0.0
  %450 = vmatprep.subr.mxu0 0.0
  %451 = vmatpush1.msra.mxu0 0.0
  %452 = vmatprep.subr.mxu0 0.0
  %453 = vmatpush1.msra.mxu0 0.0
  %454 = vmatprep.subr.mxu0 0.0
  %455 = vmatpush1.msra.mxu0 0.0
  %456 = vmatprep.subr.mxu0 0.0
  %457 = vmatpush1.msra.mxu0 0.0
  %458 = vmatprep.subr.mxu0 0.0
  %459 = vmatpush1.msra.mxu0 0.0
  %460 = vmatprep.subr.mxu0 0.0
  %461 = vmatpush1.msra.mxu0 0.0
  %462 = vmatprep.subr.mxu0 0.0
  %463 = vmatpush1.msra.mxu0 0.0
  %464 = vmatprep.subr.mxu0 0.0
  %465 = vmatpush1.msra.mxu0 0.0
  %466 = vmatprep.subr.mxu0 0.0
  %467 = vmatpush1.msra.mxu0 0.0
  %468 = vmatprep.subr.mxu0 0.0
  %469 = vmatpush1.msra.mxu0 0.0
  %470 = vmatprep.subr.mxu0 0.0
  %471 = vmatpush1.msra.mxu0 0.0
  %472 = vmatprep.subr.mxu0 0.0
  %473 = vmatpush1.msra.mxu0 0.0
  %474 = vmatprep.subr.mxu0 0.0
  %475 = vmatpush1.msra.mxu0 0.0
  %476 = vmatprep.subr.mxu0 0.0
  %477 = vmatpush1.msra.mxu0 0.0
  %478 = vmatprep.subr.mxu0 0.0
  %479 = vmatpush1.msra.mxu0 0.0
  %480 = vmatprep.subr.mxu0 0.0
  %481 = vmatpush1.msra.mxu0 0.0
  %482 = vmatprep.subr.mxu0 0.0
  %483 = vmatpush1.msra.mxu0 0.0
  %484 = vmatprep.subr.mxu0 0.0
  %485 = vmatpush1.msra.mxu0 0.0
  %486 = vmatprep.subr.mxu0 0.0
  %487 = vmatpush1.msra.mxu0 0.0
  %488 = vmatprep.subr.mxu0 0.0
  %489 = vmatpush1.msra.mxu0 0.0
  %490 = vmatprep.subr.mxu0 0.0
  %491 = vmatpush1.msra.mxu0 0.0
  %492 = vmatprep.subr.mxu0 0.0
  %493 = vmatpush1.msra.mxu0 0.0
  %494 = vmatprep.subr.mxu0 0.0
  %495 = vmatpush1.msra.mxu0 0.0
  %496 = vmatprep.subr.mxu0 0.0
  %497 = vmatpush1.msra.mxu0 0.0
  %498 = vmatprep.subr.mxu0 0.0
  %499 = vmatpush1.msra.mxu0 0.0
  %500 = vmatprep.subr.mxu0 0.0
  %501 = vmatpush1.msra.mxu0 0.0
  %502 = vmatprep.subr.mxu0 0.0
  %503 = vmatpush1.msra.mxu0 0.0
  %504 = vmatprep.mubr.f32.mxu0 0.0
  %505 = vmatmul.mubr.f32.gmra.mrb[0].mxu0 %v438
  %v506 = vpop.f32.mrb[0].mxu0
  %v507 = vadd.f32 0.0, %v506
  %v508 = vpop.f32.mrb[0].mxu0
  %509 = vdwg.mxu0
  %v510 = vadd.f32 %v436, %v507
  %v511 = vtanh.pop %v510
  %v512 = vld [vmem:[#allocation2 + $0x20] sm:$0xff]
  %v514 = vsel %vm195, %v511, 0
  %516 = vmatprep.subr.mxu0 0.0
  %517 = vmatpush1.msra.mxu0 %v204
  %518 = vmatprep.subr.mxu0 0.0
  %519 = vmatpush1.msra.mxu0 %v205
  %520 = vmatprep.subr.mxu0 0.0
  %521 = vmatpush1.msra.mxu0 %v206
  %522 = vmatprep.subr.mxu0 0.0
  %523 = vmatpush1.msra.mxu0 %v207
  %524 = vmatprep.subr.mxu0 0.0
  %525 = vmatpush1.msra.mxu0 0.0
  %526 = vmatprep.subr.mxu0 0.0
  %527 = vmatpush1.msra.mxu0 0.0
  %528 = vmatprep.subr.mxu0 0.0
  %529 = vmatpush1.msra.mxu0 0.0
  %530 = vmatprep.subr.mxu0 0.0
  %531 = vmatpush1.msra.mxu0 0.0
  %532 = vmatprep.subr.mxu0 0.0
  %533 = vmatpush1.msra.mxu0 0.0
  %534 = vmatprep.subr.mxu0 0.0
  %535 = vmatpush1.msra.mxu0 0.0
  %536 = vmatprep.subr.mxu0 0.0
  %537 = vmatpush1.msra.mxu0 0.0
  %538 = vmatprep.subr.mxu0 0.0
  %539 = vmatpush1.msra.mxu0 0.0
  %540 = vmatprep.subr.mxu0 0.0
  %541 = vmatpush1.msra.mxu0 0.0
  %542 = vmatprep.subr.mxu0 0.0
  %543 = vmatpush1.msra.mxu0 0.0
  %544 = vmatprep.subr.mxu0 0.0
  %545 = vmatpush1.msra.mxu0 0.0
  %546 = vmatprep.subr.mxu0 0.0
  %547 = vmatpush1.msra.mxu0 0.0
  %548 = vmatprep.subr.mxu0 0.0
  %549 = vmatpush1.msra.mxu0 0.0
  %550 = vmatprep.subr.mxu0 0.0
  %551 = vmatpush1.msra.mxu0 0.0
  %552 = vmatprep.subr.mxu0 0.0
  %553 = vmatpush1.msra.mxu0 0.0
  %554 = vmatprep.subr.mxu0 0.0
  %555 = vmatpush1.msra.mxu0 0.0
  %556 = vmatprep.subr.mxu0 0.0
  %557 = vmatpush1.msra.mxu0 0.0
  %558 = vmatprep.subr.mxu0 0.0
  %559 = vmatpush1.msra.mxu0 0.0
  %560 = vmatprep.subr.mxu0 0.0
  %561 = vmatpush1.msra.mxu0 0.0
  %562 = vmatprep.subr.mxu0 0.0
  %563 = vmatpush1.msra.mxu0 0.0
  %564 = vmatprep.subr.mxu0 0.0
  %565 = vmatpush1.msra.mxu0 0.0
  %566 = vmatprep.subr.mxu0 0.0
  %567 = vmatpush1.msra.mxu0 0.0
  %568 = vmatprep.subr.mxu0 0.0
  %569 = vmatpush1.msra.mxu0 0.0
  %570 = vmatprep.subr.mxu0 0.0
  %571 = vmatpush1.msra.mxu0 0.0
  %572 = vmatprep.subr.mxu0 0.0
  %573 = vmatpush1.msra.mxu0 0.0
  %574 = vmatprep.subr.mxu0 0.0
  %575 = vmatpush1.msra.mxu0 0.0
  %576 = vmatprep.subr.mxu0 0.0
  %577 = vmatpush1.msra.mxu0 0.0
  %578 = vmatprep.subr.mxu0 0.0
  %579 = vmatpush1.msra.mxu0 0.0
  %580 = vmatprep.mubr.f32.mxu0 0.0
  %581 = vmatmul.mubr.f32.gmra.mrb[0].mxu0 %v514
  %v582 = vpop.f32.mrb[0].mxu0
  %v583 = vadd.f32 0.0, %v582
  %v584 = vpop.f32.mrb[0].mxu0
  %585 = vdwg.mxu0
  %v586 = vadd.f32 %v512, %v583
  %v587 = vtanh.pop %v586
  %v588 = vld [vmem:[#allocation2 + $0x28] sm:$0xff]
  %v590 = vsel %vm195, %v587, 0
  %592 = vmatprep.subr.mxu0 0.0
  %593 = vmatpush1.msra.mxu0 %v204
  %594 = vmatprep.subr.mxu0 0.0
  %595 = vmatpush1.msra.mxu0 %v205
  %596 = vmatprep.subr.mxu0 0.0
  %597 = vmatpush1.msra.mxu0 %v206
  %598 = vmatprep.subr.mxu0 0.0
  %599 = vmatpush1.msra.mxu0 %v207
  %600 = vmatprep.subr.mxu0 0.0
  %601 = vmatpush1.msra.mxu0 0.0
  %602 = vmatprep.subr.mxu0 0.0
  %603 = vmatpush1.msra.mxu0 0.0
  %604 = vmatprep.subr.mxu0 0.0
  %605 = vmatpush1.msra.mxu0 0.0
  %606 = vmatprep.subr.mxu0 0.0
  %607 = vmatpush1.msra.mxu0 0.0
  %608 = vmatprep.subr.mxu0 0.0
  %609 = vmatpush1.msra.mxu0 0.0
  %610 = vmatprep.subr.mxu0 0.0
  %611 = vmatpush1.msra.mxu0 0.0
  %612 = vmatprep.subr.mxu0 0.0
  %613 = vmatpush1.msra.mxu0 0.0
  %614 = vmatprep.subr.mxu0 0.0
  %615 = vmatpush1.msra.mxu0 0.0
  %616 = vmatprep.subr.mxu0 0.0
  %617 = vmatpush1.msra.mxu0 0.0
  %618 = vmatprep.subr.mxu0 0.0
  %619 = vmatpush1.msra.mxu0 0.0
  %620 = vmatprep.subr.mxu0 0.0
  %621 = vmatpush1.msra.mxu0 0.0
  %622 = vmatprep.subr.mxu0 0.0
  %623 = vmatpush1.msra.mxu0 0.0
  %624 = vmatprep.subr.mxu0 0.0
  %625 = vmatpush1.msra.mxu0 0.0
  %626 = vmatprep.subr.mxu0 0.0
  %627 = vmatpush1.msra.mxu0 0.0
  %628 = vmatprep.subr.mxu0 0.0
  %629 = vmatpush1.msra.mxu0 0.0
  %630 = vmatprep.subr.mxu0 0.0
  %631 = vmatpush1.msra.mxu0 0.0
  %632 = vmatprep.subr.mxu0 0.0
  %633 = vmatpush1.msra.mxu0 0.0
  %634 = vmatprep.subr.mxu0 0.0
  %635 = vmatpush1.msra.mxu0 0.0
  %636 = vmatprep.subr.mxu0 0.0
  %637 = vmatpush1.msra.mxu0 0.0
  %638 = vmatprep.subr.mxu0 0.0
  %639 = vmatpush1.msra.mxu0 0.0
  %640 = vmatprep.subr.mxu0 0.0
  %641 = vmatpush1.msra.mxu0 0.0
  %642 = vmatprep.subr.mxu0 0.0
  %643 = vmatpush1.msra.mxu0 0.0
  %644 = vmatprep.subr.mxu0 0.0
  %645 = vmatpush1.msra.mxu0 0.0
  %646 = vmatprep.subr.mxu0 0.0
  %647 = vmatpush1.msra.mxu0 0.0
  %648 = vmatprep.subr.mxu0 0.0
  %649 = vmatpush1.msra.mxu0 0.0
  %650 = vmatprep.subr.mxu0 0.0
  %651 = vmatpush1.msra.mxu0 0.0
  %652 = vmatprep.subr.mxu0 0.0
  %653 = vmatpush1.msra.mxu0 0.0
  %654 = vmatprep.subr.mxu0 0.0
  %655 = vmatpush1.msra.mxu0 0.0
  %656 = vmatprep.mubr.f32.mxu0 0.0
  %657 = vmatmul.mubr.f32.gmra.mrb[0].mxu0 %v590
  %v658 = vpop.f32.mrb[0].mxu0
  %v659 = vadd.f32 0.0, %v658
  %v660 = vpop.f32.mrb[0].mxu0
  %661 = vdwg.mxu0
  %v662 = vadd.f32 %v588, %v659
  %v663 = vtanh.pop %v662
  %v664 = vld [vmem:[#allocation2 + $0x30] sm:$0xff]
  %v666 = vsel %vm195, %v663, 0
  %668 = vmatprep.subr.mxu0 0.0
  %669 = vmatpush1.msra.mxu0 %v204
  %670 = vmatprep.subr.mxu0 0.0
  %671 = vmatpush1.msra.mxu0 %v205
  %672 = vmatprep.subr.mxu0 0.0
  %673 = vmatpush1.msra.mxu0 %v206
  %674 = vmatprep.subr.mxu0 0.0
  %675 = vmatpush1.msra.mxu0 %v207
  %676 = vmatprep.subr.mxu0 0.0
  %677 = vmatpush1.msra.mxu0 0.0
  %678 = vmatprep.subr.mxu0 0.0
  %679 = vmatpush1.msra.mxu0 0.0
  %680 = vmatprep.subr.mxu0 0.0
  %681 = vmatpush1.msra.mxu0 0.0
  %682 = vmatprep.subr.mxu0 0.0
  %683 = vmatpush1.msra.mxu0 0.0
  %684 = vmatprep.subr.mxu0 0.0
  %685 = vmatpush1.msra.mxu0 0.0
  %686 = vmatprep.subr.mxu0 0.0
  %687 = vmatpush1.msra.mxu0 0.0
  %688 = vmatprep.subr.mxu0 0.0
  %689 = vmatpush1.msra.mxu0 0.0
  %690 = vmatprep.subr.mxu0 0.0
  %691 = vmatpush1.msra.mxu0 0.0
  %692 = vmatprep.subr.mxu0 0.0
  %693 = vmatpush1.msra.mxu0 0.0
  %694 = vmatprep.subr.mxu0 0.0
  %695 = vmatpush1.msra.mxu0 0.0
  %696 = vmatprep.subr.mxu0 0.0
  %697 = vmatpush1.msra.mxu0 0.0
  %698 = vmatprep.subr.mxu0 0.0
  %699 = vmatpush1.msra.mxu0 0.0
  %700 = vmatprep.subr.mxu0 0.0
  %701 = vmatpush1.msra.mxu0 0.0
  %702 = vmatprep.subr.mxu0 0.0
  %703 = vmatpush1.msra.mxu0 0.0
  %704 = vmatprep.subr.mxu0 0.0
  %705 = vmatpush1.msra.mxu0 0.0
  %706 = vmatprep.subr.mxu0 0.0
  %707 = vmatpush1.msra.mxu0 0.0
  %708 = vmatprep.subr.mxu0 0.0
  %709 = vmatpush1.msra.mxu0 0.0
  %710 = vmatprep.subr.mxu0 0.0
  %711 = vmatpush1.msra.mxu0 0.0
  %712 = vmatprep.subr.mxu0 0.0
  %713 = vmatpush1.msra.mxu0 0.0
  %714 = vmatprep.subr.mxu0 0.0
  %715 = vmatpush1.msra.mxu0 0.0
  %716 = vmatprep.subr.mxu0 0.0
  %717 = vmatpush1.msra.mxu0 0.0
  %718 = vmatprep.subr.mxu0 0.0
  %719 = vmatpush1.msra.mxu0 0.0
  %720 = vmatprep.subr.mxu0 0.0
  %721 = vmatpush1.msra.mxu0 0.0
  %722 = vmatprep.subr.mxu0 0.0
  %723 = vmatpush1.msra.mxu0 0.0
  %724 = vmatprep.subr.mxu0 0.0
  %725 = vmatpush1.msra.mxu0 0.0
  %726 = vmatprep.subr.mxu0 0.0
  %727 = vmatpush1.msra.mxu0 0.0
  %728 = vmatprep.subr.mxu0 0.0
  %729 = vmatpush1.msra.mxu0 0.0
  %730 = vmatprep.subr.mxu0 0.0
  %731 = vmatpush1.msra.mxu0 0.0
  %732 = vmatprep.mubr.f32.mxu0 0.0
  %733 = vmatmul.mubr.f32.gmra.mrb[0].mxu0 %v666
  %v734 = vpop.f32.mrb[0].mxu0
  %v735 = vadd.f32 0.0, %v734
  %v736 = vpop.f32.mrb[0].mxu0
  %737 = vdwg.mxu0
  %v738 = vadd.f32 %v664, %v735
  %v739 = vtanh.pop %v738
  %v740 = vld [vmem:[#allocation2 + $0x38] sm:$0xff]
  %v742 = vsel %vm195, %v739, 0
  %744 = vmatprep.subr.mxu0 0.0
  %745 = vmatpush1.msra.mxu0 %v204
  %746 = vmatprep.subr.mxu0 0.0
  %747 = vmatpush1.msra.mxu0 %v205
  %748 = vmatprep.subr.mxu0 0.0
  %749 = vmatpush1.msra.mxu0 %v206
  %750 = vmatprep.subr.mxu0 0.0
  %751 = vmatpush1.msra.mxu0 %v207
  %752 = vmatprep.subr.mxu0 0.0
  %753 = vmatpush1.msra.mxu0 0.0
  %754 = vmatprep.subr.mxu0 0.0
  %755 = vmatpush1.msra.mxu0 0.0
  %756 = vmatprep.subr.mxu0 0.0
  %757 = vmatpush1.msra.mxu0 0.0
  %758 = vmatprep.subr.mxu0 0.0
  %759 = vmatpush1.msra.mxu0 0.0
  %760 = vmatprep.subr.mxu0 0.0
  %761 = vmatpush1.msra.mxu0 0.0
  %762 = vmatprep.subr.mxu0 0.0
  %763 = vmatpush1.msra.mxu0 0.0
  %764 = vmatprep.subr.mxu0 0.0
  %765 = vmatpush1.msra.mxu0 0.0
  %766 = vmatprep.subr.mxu0 0.0
  %767 = vmatpush1.msra.mxu0 0.0
  %768 = vmatprep.subr.mxu0 0.0
  %769 = vmatpush1.msra.mxu0 0.0
  %770 = vmatprep.subr.mxu0 0.0
  %771 = vmatpush1.msra.mxu0 0.0
  %772 = vmatprep.subr.mxu0 0.0
  %773 = vmatpush1.msra.mxu0 0.0
  %774 = vmatprep.subr.mxu0 0.0
  %775 = vmatpush1.msra.mxu0 0.0
  %776 = vmatprep.subr.mxu0 0.0
  %777 = vmatpush1.msra.mxu0 0.0
  %778 = vmatprep.subr.mxu0 0.0
  %779 = vmatpush1.msra.mxu0 0.0
  %780 = vmatprep.subr.mxu0 0.0
  %781 = vmatpush1.msra.mxu0 0.0
  %782 = vmatprep.subr.mxu0 0.0
  %783 = vmatpush1.msra.mxu0 0.0
  %784 = vmatprep.subr.mxu0 0.0
  %785 = vmatpush1.msra.mxu0 0.0
  %786 = vmatprep.subr.mxu0 0.0
  %787 = vmatpush1.msra.mxu0 0.0
  %788 = vmatprep.subr.mxu0 0.0
  %789 = vmatpush1.msra.mxu0 0.0
  %790 = vmatprep.subr.mxu0 0.0
  %791 = vmatpush1.msra.mxu0 0.0
  %792 = vmatprep.subr.mxu0 0.0
  %793 = vmatpush1.msra.mxu0 0.0
  %794 = vmatprep.subr.mxu0 0.0
  %795 = vmatpush1.msra.mxu0 0.0
  %796 = vmatprep.subr.mxu0 0.0
  %797 = vmatpush1.msra.mxu0 0.0
  %798 = vmatprep.subr.mxu0 0.0
  %799 = vmatpush1.msra.mxu0 0.0
  %800 = vmatprep.subr.mxu0 0.0
  %801 = vmatpush1.msra.mxu0 0.0
  %802 = vmatprep.subr.mxu0 0.0
  %803 = vmatpush1.msra.mxu0 0.0
  %804 = vmatprep.subr.mxu0 0.0
  %805 = vmatpush1.msra.mxu0 0.0
  %806 = vmatprep.subr.mxu0 0.0
  %807 = vmatpush1.msra.mxu0 0.0
  %808 = vmatprep.mubr.f32.mxu0 0.0
  %809 = vmatmul.mubr.f32.gmra.mrb[0].mxu0 %v742
  %v810 = vpop.f32.mrb[0].mxu0
  %v811 = vadd.f32 0.0, %v810
  %v812 = vpop.f32.mrb[0].mxu0
  %813 = vdwg.mxu0
  %v814 = vadd.f32 %v740, %v811
  %v815 = vtanh.pop %v814
  %v816 = vld [vmem:[%s6] sm:$0xff]
  %v817 = vld [vmem:[%s6 + $0x8] sm:$0xff]
  %v818 = vld [vmem:[%s6 + $0x10] sm:$0xff]
  %v819 = vld [vmem:[%s6 + $0x18] sm:$0xff]
  %v820 = vld [vmem:[%s7] sm:$0x1]
  %v822 = vlaneseq
  %v823 = vshrl.u32 %v822, 7
  %v824 = vsub.s32 0, %v823
  %v825 = vrot.slane %v820, %v824
  %v828 = vsel %vm195, %v815, 0
  %830 = vmatprep.subr.mxu0 0.0
  %831 = vmatpush1.msra.mxu0 %v816
  %832 = vmatprep.subr.mxu0 0.0
  %833 = vmatpush1.msra.mxu0 %v817
  %834 = vmatprep.subr.mxu0 0.0
  %835 = vmatpush1.msra.mxu0 %v818
  %836 = vmatprep.subr.mxu0 0.0
  %837 = vmatpush1.msra.mxu0 %v819
  %838 = vmatprep.subr.mxu0 0.0
  %839 = vmatpush1.msra.mxu0 0.0
  %840 = vmatprep.subr.mxu0 0.0
  %841 = vmatpush1.msra.mxu0 0.0
  %842 = vmatprep.subr.mxu0 0.0
  %843 = vmatpush1.msra.mxu0 0.0
  %844 = vmatprep.subr.mxu0 0.0
  %845 = vmatpush1.msra.mxu0 0.0
  %846 = vmatprep.subr.mxu0 0.0
  %847 = vmatpush1.msra.mxu0 0.0
  %848 = vmatprep.subr.mxu0 0.0
  %849 = vmatpush1.msra.mxu0 0.0
  %850 = vmatprep.subr.mxu0 0.0
  %851 = vmatpush1.msra.mxu0 0.0
  %852 = vmatprep.subr.mxu0 0.0
  %853 = vmatpush1.msra.mxu0 0.0
  %854 = vmatprep.subr.mxu0 0.0
  %855 = vmatpush1.msra.mxu0 0.0
  %856 = vmatprep.subr.mxu0 0.0
  %857 = vmatpush1.msra.mxu0 0.0
  %858 = vmatprep.subr.mxu0 0.0
  %859 = vmatpush1.msra.mxu0 0.0
  %860 = vmatprep.subr.mxu0 0.0
  %861 = vmatpush1.msra.mxu0 0.0
  %862 = vmatprep.subr.mxu0 0.0
  %863 = vmatpush1.msra.mxu0 0.0
  %864 = vmatprep.subr.mxu0 0.0
  %865 = vmatpush1.msra.mxu0 0.0
  %866 = vmatprep.subr.mxu0 0.0
  %867 = vmatpush1.msra.mxu0 0.0
  %868 = vmatprep.subr.mxu0 0.0
  %869 = vmatpush1.msra.mxu0 0.0
  %870 = vmatprep.subr.mxu0 0.0
  %871 = vmatpush1.msra.mxu0 0.0
  %872 = vmatprep.subr.mxu0 0.0
  %873 = vmatpush1.msra.mxu0 0.0
  %874 = vmatprep.subr.mxu0 0.0
  %875 = vmatpush1.msra.mxu0 0.0
  %876 = vmatprep.subr.mxu0 0.0
  %877 = vmatpush1.msra.mxu0 0.0
  %878 = vmatprep.subr.mxu0 0.0
  %879 = vmatpush1.msra.mxu0 0.0
  %880 = vmatprep.subr.mxu0 0.0
  %881 = vmatpush1.msra.mxu0 0.0
  %882 = vmatprep.subr.mxu0 0.0
  %883 = vmatpush1.msra.mxu0 0.0
  %884 = vmatprep.subr.mxu0 0.0
  %885 = vmatpush1.msra.mxu0 0.0
  %886 = vmatprep.subr.mxu0 0.0
  %887 = vmatpush1.msra.mxu0 0.0
  %888 = vmatprep.subr.mxu0 0.0
  %889 = vmatpush1.msra.mxu0 0.0
  %890 = vmatprep.subr.mxu0 0.0
  %891 = vmatpush1.msra.mxu0 0.0
  %892 = vmatprep.subr.mxu0 0.0
  %893 = vmatpush1.msra.mxu0 0.0
  %894 = vmatprep.mubr.f32.mxu0 0.0
  %895 = vmatmul.mubr.f32.gmra.mrb[0].mxu0 %v828
  %v896 = vpop.f32.mrb[0].mxu0
  %v897 = vadd.f32 %v825, %v896
  %v898 = vpop.f32.mrb[0].mxu0
  %899 = vdwg.mxu0
  %vm900 = vcmask 31744
  %901 = vst.msk [vmem:[%s8] sm:$0xff] %vm900, %v897
  // Predicated region
  $region34: #{tpu_custom_call.1} parent=0 // pred_check
    _
  $region35: #{tpu_custom_call.1} parent=0 // pred_check_branch
    %903 = sbr.rel (0) target = $region37
  $region36: #{tpu_custom_call.1} parent=0 // pred_region
    _
  $region37: #{tpu_custom_call.1} parent=0 // pred_fallthru
    _
  // Predicated region
  $region38: #{tpu_custom_call.1} parent=0 // pred_check
    _
  $region39: #{tpu_custom_call.1} parent=0 // pred_check_branch
    %905 = sbr.rel (0) target = $region41
  $region40: #{tpu_custom_call.1} parent=0 // pred_region
    _
  $region41: #{tpu_custom_call.1} parent=0 // pred_fallthru
    _

</llo_original>
